<compile_context>
chip_gen: v6e
topology: v6e:2x2x1
jax: 0.10.0
libtpu: 0.0.40
codegen_flags: <defaults>
</compile_context>

<pallas_src>
import math

import jax
import jax.numpy as jnp
from jax.experimental import pallas as pl
from jax.experimental.pallas import tpu as pltpu

LAYER_NORM_EPS = 1e-12
VOCAB_OUT = 768                      # fixed by the module: nn.Linear(hidden, 768)
_INV_SQRT2 = 1.0 / math.sqrt(2.0)


def _mlm_head_kernel(x_ref, w1_ref, b1_ref, gamma_ref, beta_ref,
                     w2_ref, b2_ref, o_ref):
    # x_ref: (tm, H) compute dtype      w1_ref: (H, H)        w2_ref: (H, 768)
    # b1/gamma/beta: (1, H) f32         b2: (1, 768) f32      o_ref: (tm, 768)

    # --- dense (hidden -> hidden): MXU, bf16 operands, f32 accumulation ---
    h = jnp.dot(x_ref[...], w1_ref[...],
                preferred_element_type=jnp.float32) + b1_ref[...]

    # --- gelu (erf formulation; matches the torch.erf-based gelu exactly) ---
    h = h * 0.5 * (1.0 + jax.lax.erf(h * jnp.float32(_INV_SQRT2)))

    # --- LayerNorm over hidden dim (gamma folded into the rsqrt scale) ---
    mean = jnp.mean(h, axis=-1, keepdims=True)
    var = jnp.mean(jnp.square(h - mean), axis=-1, keepdims=True)
    scale = gamma_ref[...] * jax.lax.rsqrt(var + jnp.float32(LAYER_NORM_EPS))
    h = (h - mean) * scale + beta_ref[...]

    # --- decoder (hidden -> 768) on the MXU + bias ---
    out = jnp.dot(h.astype(w2_ref.dtype), w2_ref[...],
                  preferred_element_type=jnp.float32) + b2_ref[...]
    o_ref[...] = out.astype(o_ref.dtype)


def visual_only_mlm_head(sequence_output, params, *, tile_rows=256,
                         compute_dtype=jnp.bfloat16, out_dtype=jnp.float32):
    """sequence_output: [B, S, H] -> [B, S, 768]."""
    B, S, H = sequence_output.shape
    N = B * S

    # Clamp the row tile for tiny inputs (still a multiple of the sublane, 8).
    tile_rows = max(8, min(int(tile_rows), ((N + 7) // 8) * 8))
    assert tile_rows % 8 == 0, "tile_rows must be a multiple of the sublane (8)"

    # Flatten rows, cast matmul operands to the compute dtype, pad the row
    # count to a tile multiple (padded rows are discarded after the kernel).
    x2d = sequence_output.reshape(N, H).astype(compute_dtype)
    pad = (-N) % tile_rows
    if pad:
        x2d = jnp.pad(x2d, ((0, pad), (0, 0)))
    n_padded = N + pad

    w1 = params["w_dense"].astype(compute_dtype)           # (H, H)   x @ W
    w2 = params["w_decoder"].astype(compute_dtype)         # (H, 768)
    b1 = jnp.reshape(params["b_dense"], (1, H)).astype(jnp.float32)
    gamma = jnp.reshape(params["ln_gamma"], (1, H)).astype(jnp.float32)
    beta = jnp.reshape(params["ln_beta"], (1, H)).astype(jnp.float32)
    b2 = jnp.reshape(params["b_decoder"], (1, VOCAB_OUT)).astype(jnp.float32)

    csize = jnp.dtype(compute_dtype).itemsize
    osize = jnp.dtype(out_dtype).itemsize

    # VMEM budget: double-buffered streamed x/out tiles + single-buffered
    # resident weights + f32 intermediates, with 2x headroom.  Clamped to
    # [32 MiB, 64 MiB] so it is safe on v5e/v6e (128 MiB) and v7x (64 MiB).
    vmem_need = (2 * tile_rows * H * csize                 # x tiles (double buf)
                 + 2 * tile_rows * VOCAB_OUT * osize       # out tiles (double buf)
                 + (H * H + H * VOCAB_OUT) * csize         # resident weights
                 + (3 * H + VOCAB_OUT) * 4                 # biases / gamma / beta
                 + 4 * tile_rows * H * 4)                  # f32 intermediates
    vmem_limit = int(min(64 * 1024 * 1024,
                         max(32 * 1024 * 1024, 2 * vmem_need)))

    flops = 2 * n_padded * H * (H + VOCAB_OUT) + 10 * n_padded * H
    bytes_accessed = (n_padded * H * csize
                      + n_padded * VOCAB_OUT * osize
                      + (H * H + H * VOCAB_OUT) * csize
                      + (3 * H + VOCAB_OUT) * 4)

    def invariant(shape):
        # Grid-invariant operand: constant index_map, fetched once; single
        # buffering avoids reserving 2x its VMEM footprint.
        return pl.BlockSpec(shape, lambda i: (0, 0),
                            pipeline_mode=pl.Buffered(1))

    grid = (n_padded // tile_rows,)
    out = pl.pallas_call(
        _mlm_head_kernel,
        out_shape=jax.ShapeDtypeStruct((n_padded, VOCAB_OUT), out_dtype),
        grid_spec=pltpu.PrefetchScalarGridSpec(
            num_scalar_prefetch=0,
            grid=grid,
            in_specs=[
                pl.BlockSpec((tile_rows, H), lambda i: (i, 0)),   # x tile (streamed)
                invariant((H, H)),                                # W_dense
                invariant((1, H)),                                # b_dense
                invariant((1, H)),                                # ln gamma
                invariant((1, H)),                                # ln beta
                invariant((H, VOCAB_OUT)),                        # W_decoder
                invariant((1, VOCAB_OUT)),                        # b_decoder
            ],
            out_specs=pl.BlockSpec((tile_rows, VOCAB_OUT), lambda i: (i, 0)),
        ),
        compiler_params=pltpu.CompilerParams(
            dimension_semantics=("parallel",),
            vmem_limit_bytes=vmem_limit),
        cost_estimate=pl.CostEstimate(
            flops=int(flops),
            transcendentals=int(n_padded * H),
            bytes_accessed=int(bytes_accessed)),
    )(x2d, w1, b1, gamma, beta, w2, b2)

    return out[:N].reshape(B, S, VOCAB_OUT)


def init_params(key, hidden_size):
    """Deterministic synthetic parameters (shapes match the nn.Module)."""
    k1, k2, k3, k4, k5, k6 = jax.random.split(key, 6)
    scale = 0.02
    return {
        # stored as (in, out) so the kernel uses x @ W (== x @ W_torch^T)
        "w_dense": scale * jax.random.normal(k1, (hidden_size, hidden_size), jnp.float32),
        "b_dense": scale * jax.random.normal(k2, (1, hidden_size), jnp.float32),
        "ln_gamma": 1.0 + scale * jax.random.normal(k3, (1, hidden_size), jnp.float32),
        "ln_beta": scale * jax.random.normal(k4, (1, hidden_size), jnp.float32),
        "w_decoder": scale * jax.random.normal(k5, (hidden_size, VOCAB_OUT), jnp.float32),
        "b_decoder": scale * jax.random.normal(k6, (1, VOCAB_OUT), jnp.float32),
    }


def _reference(x, p, compute_dtype=jnp.bfloat16):
    """Pure-JAX reference, mirroring the kernel's bf16 matmul-operand
    quantization (f32 accumulation) so the comparison is tight."""
    f32 = jnp.float32
    B, S, H = x.shape
    xq = x.reshape(-1, H).astype(compute_dtype).astype(f32)
    w1 = p["w_dense"].astype(compute_dtype).astype(f32)
    w2 = p["w_decoder"].astype(compute_dtype).astype(f32)

    h = xq @ w1 + p["b_dense"][0]
    h = h * 0.5 * (1.0 + jax.lax.erf(h * jnp.float32(_INV_SQRT2)))
    mean = jnp.mean(h, -1, keepdims=True)
    var = jnp.mean((h - mean) ** 2, -1, keepdims=True)
    h = (h - mean) * jax.lax.rsqrt(var + jnp.float32(LAYER_NORM_EPS))
    h = h * p["ln_gamma"][0] + p["ln_beta"][0]
    out = h.astype(compute_dtype).astype(f32) @ w2 + p["b_decoder"][0]
    return out.reshape(B, S, VOCAB_OUT)


if __name__ == "__main__":
    key = jax.random.PRNGKey(0)
    B, S, H = 2, 8, 32   # small shapes: batch=2, seq=8, hidden=32

    kx, kp = jax.random.split(key)
    sequence_output = jax.random.normal(kx, (B, S, H), jnp.float32)
    params = init_params(kp, H)

    out = visual_only_mlm_head(sequence_output, params)
    out = jax.block_until_ready(out)

    ref = _reference(sequence_output, params)
    assert out.shape == (B, S, VOCAB_OUT)
    max_err = float(jnp.max(jnp.abs(out - ref)))
    assert max_err < 3e-3, f"mismatch vs reference: max_err={max_err}"

    print("KERNEL_OK")
</pallas_src>

<mosaic_0001>
module attributes {stable_mosaic.version = 11 : i64} {
  func.func @_mlm_head_kernel(%arg0: i32, %arg1: memref<16x32xbf16, #tpu.memory_space<vmem>>, %arg2: memref<32x32xbf16, #tpu.memory_space<vmem>>, %arg3: memref<1x32xf32, #tpu.memory_space<vmem>>, %arg4: memref<1x32xf32, #tpu.memory_space<vmem>>, %arg5: memref<1x32xf32, #tpu.memory_space<vmem>>, %arg6: memref<32x768xbf16, #tpu.memory_space<vmem>>, %arg7: memref<1x768xf32, #tpu.memory_space<vmem>>, %arg8: memref<16x768xf32, #tpu.memory_space<vmem>>) attributes {dimension_semantics = [#tpu.dimension_semantics<parallel>], iteration_bounds = array<i64: 1>, scalar_prefetch = 0 : i64, scratch_operands = 0 : i64, tpu.core_type = #tpu.core_type<tc>, window_params = [{transform_indices = @transform_0, window_bounds = array<i64: 16, 32>}, {pipeline_mode = #tpu.pipeline_mode<synchronous>, transform_indices = @transform_1, window_bounds = array<i64: 32, 32>}, {pipeline_mode = #tpu.pipeline_mode<synchronous>, transform_indices = @transform_2, window_bounds = array<i64: 1, 32>}, {pipeline_mode = #tpu.pipeline_mode<synchronous>, transform_indices = @transform_3, window_bounds = array<i64: 1, 32>}, {pipeline_mode = #tpu.pipeline_mode<synchronous>, transform_indices = @transform_4, window_bounds = array<i64: 1, 32>}, {pipeline_mode = #tpu.pipeline_mode<synchronous>, transform_indices = @transform_5, window_bounds = array<i64: 32, 768>}, {pipeline_mode = #tpu.pipeline_mode<synchronous>, transform_indices = @transform_6, window_bounds = array<i64: 1, 768>}, {transform_indices = @transform_7, window_bounds = array<i64: 16, 768>}]} {
    %c0 = arith.constant 0 : index
    %c0_0 = arith.constant 0 : index
    %0 = vector.load %arg1[%c0, %c0_0] : memref<16x32xbf16, #tpu.memory_space<vmem>>, vector<16x32xbf16>
    %c0_1 = arith.constant 0 : index
    %c0_2 = arith.constant 0 : index
    %1 = vector.load %arg2[%c0_1, %c0_2] : memref<32x32xbf16, #tpu.memory_space<vmem>>, vector<32x32xbf16>
    %cst = arith.constant dense<0.000000e+00> : vector<16x32xf32>
    %2 = tpu.matmul %0, %1, %cst {dimension_numbers = #tpu.dot_dimension_numbers<[1], [0], [0], [1], [0, 0, 1, 1], [], []>} : vector<16x32xbf16>, vector<32x32xbf16>, vector<16x32xf32> -> vector<16x32xf32>
    %c0_3 = arith.constant 0 : index
    %c0_4 = arith.constant 0 : index
    %3 = vector.load %arg3[%c0_3, %c0_4] : memref<1x32xf32, #tpu.memory_space<vmem>>, vector<1x32xf32>
    %4 = vector.broadcast %3 : vector<1x32xf32> to vector<16x32xf32>
    %5 = arith.addf %2, %4 : vector<16x32xf32>
    %cst_5 = arith.constant 5.000000e-01 : f32
    %6 = vector.broadcast %cst_5 : f32 to vector<16x32xf32>
    %7 = arith.mulf %5, %6 : vector<16x32xf32>
    %cst_6 = arith.constant 0.707106769 : f32
    %8 = vector.broadcast %cst_6 : f32 to vector<16x32xf32>
    %9 = arith.mulf %5, %8 : vector<16x32xf32>
    %10 = math.erf %9 : vector<16x32xf32>
    %cst_7 = arith.constant 1.000000e+00 : f32
    %11 = vector.broadcast %cst_7 : f32 to vector<16x32xf32>
    %12 = arith.addf %11, %10 : vector<16x32xf32>
    %13 = arith.mulf %7, %12 : vector<16x32xf32>
    %cst_8 = arith.constant dense<0.000000e+00> : vector<16xf32>
    %14 = vector.multi_reduction <add>, %13, %cst_8 [1] : vector<16x32xf32> to vector<16xf32>
    %15 = vector.shape_cast %14 : vector<16xf32> to vector<16x1xf32>
    %cst_9 = arith.constant 3.200000e+01 : f32
    %16 = vector.broadcast %cst_9 : f32 to vector<16x1xf32>
    %17 = arith.divf %15, %16 : vector<16x1xf32>
    %18 = vector.broadcast %17 : vector<16x1xf32> to vector<16x32xf32>
    %19 = arith.subf %13, %18 : vector<16x32xf32>
    %20 = arith.mulf %19, %19 : vector<16x32xf32>
    %cst_10 = arith.constant dense<0.000000e+00> : vector<16xf32>
    %21 = vector.multi_reduction <add>, %20, %cst_10 [1] : vector<16x32xf32> to vector<16xf32>
    %22 = vector.shape_cast %21 : vector<16xf32> to vector<16x1xf32>
    %cst_11 = arith.constant 3.200000e+01 : f32
    %23 = vector.broadcast %cst_11 : f32 to vector<16x1xf32>
    %24 = arith.divf %22, %23 : vector<16x1xf32>
    %c0_12 = arith.constant 0 : index
    %c0_13 = arith.constant 0 : index
    %25 = vector.load %arg4[%c0_12, %c0_13] : memref<1x32xf32, #tpu.memory_space<vmem>>, vector<1x32xf32>
    %cst_14 = arith.constant 9.99999996E-13 : f32
    %26 = vector.broadcast %cst_14 : f32 to vector<16x1xf32>
    %27 = arith.addf %24, %26 : vector<16x1xf32>
    %28 = math.rsqrt %27 : vector<16x1xf32>
    %29 = vector.broadcast %25 : vector<1x32xf32> to vector<16x32xf32>
    %30 = vector.broadcast %28 : vector<16x1xf32> to vector<16x32xf32>
    %31 = arith.mulf %29, %30 : vector<16x32xf32>
    %32 = vector.broadcast %17 : vector<16x1xf32> to vector<16x32xf32>
    %33 = arith.subf %13, %32 : vector<16x32xf32>
    %34 = arith.mulf %33, %31 : vector<16x32xf32>
    %c0_15 = arith.constant 0 : index
    %c0_16 = arith.constant 0 : index
    %35 = vector.load %arg5[%c0_15, %c0_16] : memref<1x32xf32, #tpu.memory_space<vmem>>, vector<1x32xf32>
    %36 = vector.broadcast %35 : vector<1x32xf32> to vector<16x32xf32>
    %37 = arith.addf %34, %36 : vector<16x32xf32>
    %38 = arith.truncf %37 : vector<16x32xf32> to vector<16x32xbf16>
    %c0_17 = arith.constant 0 : index
    %c0_18 = arith.constant 0 : index
    %39 = vector.load %arg6[%c0_17, %c0_18] : memref<32x768xbf16, #tpu.memory_space<vmem>>, vector<32x768xbf16>
    %cst_19 = arith.constant dense<0.000000e+00> : vector<16x768xf32>
    %40 = tpu.matmul %38, %39, %cst_19 {dimension_numbers = #tpu.dot_dimension_numbers<[1], [0], [0], [1], [0, 0, 1, 1], [], []>} : vector<16x32xbf16>, vector<32x768xbf16>, vector<16x768xf32> -> vector<16x768xf32>
    %c0_20 = arith.constant 0 : index
    %c0_21 = arith.constant 0 : index
    %41 = vector.load %arg7[%c0_20, %c0_21] : memref<1x768xf32, #tpu.memory_space<vmem>>, vector<1x768xf32>
    %42 = vector.broadcast %41 : vector<1x768xf32> to vector<16x768xf32>
    %43 = arith.addf %40, %42 : vector<16x768xf32>
    %c0_22 = arith.constant 0 : index
    %c0_23 = arith.constant 0 : index
    %44 = vector.load %arg8[%c0_22, %c0_23] : memref<16x768xf32, #tpu.memory_space<vmem>>, vector<16x768xf32>
    tpu.vector_store %arg8[%c0_22, %c0_23], %43 {strides = array<i32>} : memref<16x768xf32, #tpu.memory_space<vmem>>, vector<16x768xf32>,
    return
  }
  func.func @transform_0(%arg0: i32) -> (i32, i32) {
    %c0_i32 = arith.constant 0 : i32
    %c0_i32_0 = arith.constant 0 : i32
    return %arg0, %c0_i32 : i32, i32
  }
  func.func @transform_1(%arg0: i32) -> (i32, i32) {
    %c0_i32 = arith.constant 0 : i32
    %c0_i32_0 = arith.constant 0 : i32
    %c0_i32_1 = arith.constant 0 : i32
    return %c0_i32, %c0_i32_0 : i32, i32
  }
  func.func @transform_2(%arg0: i32) -> (i32, i32) {
    %c0_i32 = arith.constant 0 : i32
    %c0_i32_0 = arith.constant 0 : i32
    %c0_i32_1 = arith.constant 0 : i32
    return %c0_i32, %c0_i32_0 : i32, i32
  }
  func.func @transform_3(%arg0: i32) -> (i32, i32) {
    %c0_i32 = arith.constant 0 : i32
    %c0_i32_0 = arith.constant 0 : i32
    %c0_i32_1 = arith.constant 0 : i32
    return %c0_i32, %c0_i32_0 : i32, i32
  }
  func.func @transform_4(%arg0: i32) -> (i32, i32) {
    %c0_i32 = arith.constant 0 : i32
    %c0_i32_0 = arith.constant 0 : i32
    %c0_i32_1 = arith.constant 0 : i32
    return %c0_i32, %c0_i32_0 : i32, i32
  }
  func.func @transform_5(%arg0: i32) -> (i32, i32) {
    %c0_i32 = arith.constant 0 : i32
    %c0_i32_0 = arith.constant 0 : i32
    %c0_i32_1 = arith.constant 0 : i32
    return %c0_i32, %c0_i32_0 : i32, i32
  }
  func.func @transform_6(%arg0: i32) -> (i32, i32) {
    %c0_i32 = arith.constant 0 : i32
    %c0_i32_0 = arith.constant 0 : i32
    %c0_i32_1 = arith.constant 0 : i32
    return %c0_i32, %c0_i32_0 : i32, i32
  }
  func.func @transform_7(%arg0: i32) -> (i32, i32) {
    %c0_i32 = arith.constant 0 : i32
    %c0_i32_0 = arith.constant 0 : i32
    return %arg0, %c0_i32 : i32, i32
  }
}

</mosaic_0001>

<llo_original>
// kernel: tpu_custom_call.1
$region0: #{tpu_custom_call.1}
  #allocation0 [shape = 'u32[]', space=smem, size = 0x4, offset = 0x4, fixed_abs, tag = 'smem constant byte address 0x4 - core index']
  #allocation1 [shape = 'u32[144,128]{1,0:T(1,128)}', space=vmem, size = 0x12000, scoped, tag = 'internal scratch']
  %s0 = inlined_call_operand.hbm [shape: bf16[16,32], index: 0, kind: input, shape index: {}]
  %s1 = inlined_call_operand.hbm [shape: bf16[32,32], index: 1, kind: input, shape index: {}]
  %s2 = inlined_call_operand.vmem [shape: f32[1,32], index: 2, kind: input, shape index: {}]
  %s3 = inlined_call_operand.vmem [shape: f32[1,32], index: 3, kind: input, shape index: {}]
  %s4 = inlined_call_operand.vmem [shape: f32[1,32], index: 4, kind: input, shape index: {}]
  %s5 = inlined_call_operand.hbm [shape: bf16[32,768], index: 5, kind: input, shape index: {}]
  %s6 = inlined_call_operand.vmem [shape: f32[1,768], index: 6, kind: input, shape index: {}]
  %s7 = inlined_call_operand.hbm [shape: f32[16,768], index: 7, kind: output, shape index: {}]
  %s8 = sld [smem:[#allocation0]]
  $region50: #{tpu_custom_call.1} parent=0
    _
  %s10 = ssub.s32 1, %s8
  %s11 = scalar_select 0, %s10, %s8
  $region1: #{tpu_custom_call.1} parent=0
    #allocation2 [shape = 'u8[4096]{0}', space=vmem, size = 0x1000, scoped, tag = 'input window, operand 0, single buffered']
    #allocation3 [shape = 's32[1]{0}', space=sflag, size = 0x4, scoped, tag = 'scoped memory for tpu_custom_call.1']
    #allocation4 [shape = 's32[1]{0}', space=sflag, size = 0x4, scoped, tag = 'scoped memory for tpu_custom_call.1']
    #allocation5 [shape = 'u8[8192]{0}', space=vmem, size = 0x2000, scoped, tag = 'input window, operand 1, single buffered']
    #allocation6 [shape = 's32[1]{0}', space=sflag, size = 0x4, scoped, tag = 'scoped memory for tpu_custom_call.1']
    #allocation7 [shape = 'u8[49152]{0}', space=vmem, size = 0xc000, scoped, tag = 'input window, operand 5, single buffered']
    #allocation8 [shape = 'u8[49152]{0}', space=vmem, size = 0xc000, scoped, tag = 'output window, operand 0, single buffered']
    %12 = vsyncpa [#allocation3], 0
    %13 = vsyncpa [#allocation6], 0
    %14 = vsyncpa [#allocation4], 0
    // Predicated region
    $region2: #{tpu_custom_call.1} parent=1 // pred_check
      _
    $region3: #{tpu_custom_call.1} parent=1 // pred_check_branch
      %16 = sbr.rel (0) target = $region5
    $region4: #{tpu_custom_call.1} parent=1 // pred_region
      %s18 = ssub.s32 128, 128
      %19 = vsyncadd [#allocation3], %s18
      %s20 = sshll.u32 [#allocation2], 4
      %s21 = int_to_ptr.vmem [resolvable:$true] %s20
      %26 = dma.hbm_to_vmem [thread:$0]  %s0, 128, %s21, [#allocation3], 64, 64, 4
    $region5: #{tpu_custom_call.1} parent=1 // pred_fallthru
      _
    // Predicated region
    $region6: #{tpu_custom_call.1} parent=1 // pred_check
      _
    $region7: #{tpu_custom_call.1} parent=1 // pred_check_branch
      %28 = sbr.rel (0) target = $region9
    $region8: #{tpu_custom_call.1} parent=1 // pred_region
      %s30 = ssub.s32 256, 256
      %31 = vsyncadd [#allocation6], %s30
      %s32 = sshll.u32 [#allocation5], 4
      %s33 = int_to_ptr.vmem [resolvable:$true] %s32
      %38 = dma.hbm_to_vmem [thread:$0]  %s1, 256, %s33, [#allocation6], 64, 64, 4
    $region9: #{tpu_custom_call.1} parent=1 // pred_fallthru
      _
    // Predicated region
    $region10: #{tpu_custom_call.1} parent=1 // pred_check
      _
    $region11: #{tpu_custom_call.1} parent=1 // pred_check_branch
      %40 = sbr.rel (0) target = $region13
    $region12: #{tpu_custom_call.1} parent=1 // pred_region
      _
    $region13: #{tpu_custom_call.1} parent=1 // pred_fallthru
      _
    // Predicated region
    $region14: #{tpu_custom_call.1} parent=1 // pred_check
      _
    $region15: #{tpu_custom_call.1} parent=1 // pred_check_branch
      %42 = sbr.rel (0) target = $region17
    $region16: #{tpu_custom_call.1} parent=1 // pred_region
      _
    $region17: #{tpu_custom_call.1} parent=1 // pred_fallthru
      _
    // Predicated region
    $region18: #{tpu_custom_call.1} parent=1 // pred_check
      _
    $region19: #{tpu_custom_call.1} parent=1 // pred_check_branch
      %44 = sbr.rel (0) target = $region21
    $region20: #{tpu_custom_call.1} parent=1 // pred_region
      _
    $region21: #{tpu_custom_call.1} parent=1 // pred_fallthru
      _
    // Predicated region
    $region22: #{tpu_custom_call.1} parent=1 // pred_check
      _
    $region23: #{tpu_custom_call.1} parent=1 // pred_check_branch
      %46 = sbr.rel (0) target = $region25
    $region24: #{tpu_custom_call.1} parent=1 // pred_region
      %s48 = ssub.s32 1536, 1536
      %49 = vsyncadd [#allocation6], %s48
      %s50 = sshll.u32 [#allocation7], 4
      %s51 = int_to_ptr.vmem [resolvable:$true] %s50
      %56 = dma.hbm_to_vmem [thread:$0]  %s5, 1536, %s51, [#allocation6], 384, 384, 24
    $region25: #{tpu_custom_call.1} parent=1 // pred_fallthru
      _
    // Predicated region
    $region26: #{tpu_custom_call.1} parent=1 // pred_check
      _
    $region27: #{tpu_custom_call.1} parent=1 // pred_check_branch
      %58 = sbr.rel (0) target = $region29
    $region28: #{tpu_custom_call.1} parent=1 // pred_region
      _
    $region29: #{tpu_custom_call.1} parent=1 // pred_fallthru
      _
    // Predicated region
    $region30: #{tpu_custom_call.1} parent=1 // pred_check
      _
    $region31: #{tpu_custom_call.1} parent=1 // pred_check_branch
      %60 = sbr.rel (0) target = $region33
    $region32: #{tpu_custom_call.1} parent=1 // pred_region
      %61 = dma.done [#allocation3], 128
    $region33: #{tpu_custom_call.1} parent=1 // pred_fallthru
      _
    // Predicated region
    $region34: #{tpu_custom_call.1} parent=1 // pred_check
      _
    $region35: #{tpu_custom_call.1} parent=1 // pred_check_branch
      %63 = sbr.rel (0) target = $region37
    $region36: #{tpu_custom_call.1} parent=1 // pred_region
      %64 = dma.done [#allocation6], 256
    $region37: #{tpu_custom_call.1} parent=1 // pred_fallthru
      _
    // Predicated region
    $region38: #{tpu_custom_call.1} parent=1 // pred_check
      _
    $region39: #{tpu_custom_call.1} parent=1 // pred_check_branch
      %66 = sbr.rel (0) target = $region41
    $region40: #{tpu_custom_call.1} parent=1 // pred_region
      %67 = dma.done [#allocation6], 1536
    $region41: #{tpu_custom_call.1} parent=1 // pred_fallthru
      _
    %v69 = vld [vmem:[#allocation2] sm:$0xf]
    %v70 = vld [vmem:[#allocation2 + $0x4] sm:$0xf]
    %v71 = vld [vmem:[#allocation5] sm:$0xf]
    %v72 = vld [vmem:[#allocation5 + $0x4] sm:$0xf]
    %v73 = vld [vmem:[#allocation5 + $0x8] sm:$0xf]
    %v74 = vld [vmem:[#allocation5 + $0xc] sm:$0xf]
    %v75 = vld [vmem:[%s2] sm:$0x1]
    %v77 = vlaneseq
    %v78 = vshrl.u32 %v77, 7
    %v79 = vsub.s32 0, %v78
    %v80 = vrot.slane %v75, %v79
    %v84 = vunpack.c.l.b16 %v69
    %v85 = vunpack.c.l.b16 %v70
    %v86 = vpack.c.b16 %v85, %v84
    %v91 = vunpack.c.l.b16 %v71
    %v92 = vunpack.c.l.b16 %v72
    %v93 = vunpack.c.l.b16 %v73
    %v94 = vunpack.c.l.b16 %v74
    %v95 = vpack.c.b16 %v92, %v91
    %v96 = vpack.c.b16 %v94, %v93
    %vm99 = vcmask 261120
    %v101 = vsel %vm99, %v86, 0
    %103 = vmatprep.subr.bf16.mxu0 0
    %104 = vmatpush1.bf16.msra.mxu0 0
    %105 = vmatprep.subr.bf16.mxu0 0
    %106 = vmatpush1.bf16.msra.mxu0 0
    %107 = vmatprep.subr.bf16.mxu0 0
    %108 = vmatpush1.bf16.msra.mxu0 0
    %109 = vmatprep.subr.bf16.mxu0 0
    %110 = vmatpush1.bf16.msra.mxu0 0
    %111 = vmatprep.subr.bf16.mxu0 0
    %112 = vmatpush1.bf16.msra.mxu0 0
    %113 = vmatprep.subr.bf16.mxu0 0
    %114 = vmatpush1.bf16.msra.mxu0 0
    %115 = vmatprep.subr.bf16.mxu0 0
    %116 = vmatpush1.bf16.msra.mxu0 %v96
    %117 = vmatprep.subr.bf16.mxu0 0
    %118 = vmatpush1.bf16.msra.mxu0 %v95
    %119 = vmatprep.subr.bf16.mxu0 0
    %120 = vmatpush2.bf16.msra.mxu0 0
    %121 = vmatprep.subr.bf16.mxu0 0
    %122 = vmatpush2.bf16.msra.mxu0 0
    %123 = vmatprep.subr.bf16.mxu0 0
    %124 = vmatpush2.bf16.msra.mxu0 0
    %125 = vmatprep.subr.bf16.mxu0 0
    %126 = vmatpush2.bf16.msra.mxu0 0
    %127 = vmatprep.subr.bf16.mxu0 0
    %128 = vmatpush2.bf16.msra.mxu0 0
    %129 = vmatprep.subr.bf16.mxu0 0
    %130 = vmatpush2.bf16.msra.mxu0 0
    %131 = vmatprep.subr.bf16.mxu0 0
    %132 = vmatpush2.bf16.msra.mxu0 0
    %133 = vmatprep.subr.bf16.mxu0 0
    %134 = vmatpush2.bf16.msra.mxu0 0
    %135 = vmatprep.mubr.bf16.mxu0 0
    %136 = vmatmul.mubr.bf16.gmra.mxu0 %v101
    %v137 = vpop.f32.mrf.mxu0
    %v138 = vadd.f32 %v80, %v137
    %v139 = vpop.f32.mrf.mxu0
    %v140 = vpop.f32.mrf.mxu0
    %v141 = vadd.f32 %v80, %v140
    %v142 = vpop.f32.mrf.mxu0
    %143 = vdwg.mxu0
    %v144 = vmul.f32 %v138, 0.5
    %v145 = vmul.f32 %v141, 0.5
    %v146 = vmul.f32 %v138, 0.70710677
    %v147 = vmul.f32 %v141, 0.70710677
    %v148 = verf.f32.pop %v146
    %v149 = verf.f32.pop %v147
    %v150 = vadd.f32 %v148, 1.0
    %v151 = vadd.f32 %v149, 1.0
    %v152 = vmul.f32 %v144, %v150
    %v153 = vmul.f32 %v145, %v151
    %v154 = vsel %vm99, %v152, 0.0
    %155 = vadd.xlane.f32.xlu0 %v154
    %v156 = vpop.xlane.xlu0 %155
    %v157 = vsel %vm99, %v153, 0.0
    %158 = vadd.xlane.f32.xlu0 %v157
    %v159 = vpop.xlane.xlu0 %158
    %v160 = vrcp.pop 32.0
    %v161 = vmul.f32 %v156, %v160
    %v162 = vmul.f32 %v159, %v160
    %v163 = vsub.f32 %v152, %v161
    %v164 = vsub.f32 %v153, %v162
    %v165 = vmul.f32 %v163, %v163
    %v166 = vmul.f32 %v164, %v164
    %v167 = vsel %vm99, %v165, 0.0
    %168 = vadd.xlane.f32.xlu0 %v167
    %v169 = vpop.xlane.xlu0 %168
    %v170 = vsel %vm99, %v166, 0.0
    %171 = vadd.xlane.f32.xlu0 %v170
    %v172 = vpop.xlane.xlu0 %171
    %v173 = vmul.f32 %v169, %v160
    %v174 = vmul.f32 %v172, %v160
    %v175 = vld [vmem:[%s3] sm:$0x1]
    %v176 = vadd.f32 %v173, 1e-12
    %v177 = vadd.f32 %v174, 1e-12
    %v178 = vrsqrt.pop %v176
    %v179 = vrsqrt.pop %v177
    %v181 = vlaneseq
    %v182 = vshrl.u32 %v181, 7
    %v183 = vsub.s32 0, %v182
    %v184 = vrot.slane %v175, %v183
    %v186 = vmul.f32 %v184, %v178
    %v187 = vmul.f32 %v184, %v179
    %v188 = vmul.f32 %v163, %v186
    %v189 = vmul.f32 %v164, %v187
    %v190 = vld [vmem:[%s4] sm:$0x1]
    %v192 = vlaneseq
    %v193 = vshrl.u32 %v192, 7
    %v194 = vsub.s32 0, %v193
    %v195 = vrot.slane %v190, %v194
    %v197 = vadd.f32 %v188, %v195
    %v198 = vadd.f32 %v189, %v195
    %v199 = vpack.c.bf16 %v198, %v197
    %v200 = vld [vmem:[#allocation7] sm:$0xff]
    %v201 = vld [vmem:[#allocation7 + $0x8] sm:$0xff]
    %v202 = vld [vmem:[#allocation7 + $0x10] sm:$0xff]
    %v203 = vld [vmem:[#allocation7 + $0x18] sm:$0xff]
    %v204 = vld [vmem:[#allocation7 + $0x20] sm:$0xff]
    %v205 = vld [vmem:[#allocation7 + $0x28] sm:$0xff]
    %v206 = vld [vmem:[#allocation7 + $0x30] sm:$0xff]
    %v207 = vld [vmem:[#allocation7 + $0x38] sm:$0xff]
    %v208 = vld [vmem:[#allocation7 + $0x40] sm:$0xff]
    %v209 = vld [vmem:[#allocation7 + $0x48] sm:$0xff]
    %v210 = vld [vmem:[#allocation7 + $0x50] sm:$0xff]
    %v211 = vld [vmem:[#allocation7 + $0x58] sm:$0xff]
    %v212 = vld [vmem:[%s6] sm:$0x3f]
    %v214 = vlaneseq
    %v215 = vshrl.u32 %v214, 7
    %v216 = vsub.s32 0, %v215
    %v217 = vrot.slane %v212, %v216
    %v218 = vlaneseq
    %v219 = vshrl.u32 %v218, 7
    %v220 = vsub.s32 1, %v219
    %v221 = vrot.slane %v212, %v220
    %v222 = vlaneseq
    %v223 = vshrl.u32 %v222, 7
    %v224 = vsub.s32 2, %v223
    %v225 = vrot.slane %v212, %v224
    %v226 = vlaneseq
    %v227 = vshrl.u32 %v226, 7
    %v228 = vsub.s32 3, %v227
    %v229 = vrot.slane %v212, %v228
    %v230 = vlaneseq
    %v231 = vshrl.u32 %v230, 7
    %v232 = vsub.s32 4, %v231
    %v233 = vrot.slane %v212, %v232
    %v234 = vlaneseq
    %v235 = vshrl.u32 %v234, 7
    %v236 = vsub.s32 5, %v235
    %v237 = vrot.slane %v212, %v236
    %v256 = vunpack.c.l.b16 %v200
    %v257 = vunpack.c.h.b16 %v200
    %v258 = vunpack.c.l.b16 %v201
    %v259 = vunpack.c.h.b16 %v201
    %v260 = vunpack.c.l.b16 %v202
    %v261 = vunpack.c.h.b16 %v202
    %v262 = vunpack.c.l.b16 %v203
    %v263 = vunpack.c.h.b16 %v203
    %v264 = vunpack.c.l.b16 %v204
    %v265 = vunpack.c.h.b16 %v204
    %v266 = vunpack.c.l.b16 %v205
    %v267 = vunpack.c.h.b16 %v205
    %v268 = vunpack.c.l.b16 %v206
    %v269 = vunpack.c.h.b16 %v206
    %v270 = vunpack.c.l.b16 %v207
    %v271 = vunpack.c.h.b16 %v207
    %v272 = vunpack.c.l.b16 %v208
    %v273 = vunpack.c.h.b16 %v208
    %v274 = vunpack.c.l.b16 %v209
    %v275 = vunpack.c.h.b16 %v209
    %v276 = vunpack.c.l.b16 %v210
    %v277 = vunpack.c.h.b16 %v210
    %v278 = vunpack.c.l.b16 %v211
    %v279 = vunpack.c.h.b16 %v211
    %v280 = vpack.c.b16 %v262, %v256
    %v281 = vpack.c.b16 %v263, %v257
    %v282 = vpack.c.b16 %v264, %v258
    %v283 = vpack.c.b16 %v265, %v259
    %v284 = vpack.c.b16 %v266, %v260
    %v285 = vpack.c.b16 %v267, %v261
    %v286 = vpack.c.b16 %v274, %v268
    %v287 = vpack.c.b16 %v275, %v269
    %v288 = vpack.c.b16 %v276, %v270
    %v289 = vpack.c.b16 %v277, %v271
    %v290 = vpack.c.b16 %v278, %v272
    %v291 = vpack.c.b16 %v279, %v273
    %v305 = vsel %vm99, %v199, 0
    %307 = vmatprep.subr.bf16.mxu0 0
    %308 = vmatpush1.bf16.msra.mxu0 0
    %309 = vmatprep.subr.bf16.mxu0 0
    %310 = vmatpush1.bf16.msra.mxu0 0
    %311 = vmatprep.subr.bf16.mxu0 0
    %312 = vmatpush1.bf16.msra.mxu0 0
    %313 = vmatprep.subr.bf16.mxu0 0
    %314 = vmatpush1.bf16.msra.mxu0 0
    %315 = vmatprep.subr.bf16.mxu0 0
    %316 = vmatpush1.bf16.msra.mxu0 0
    %317 = vmatprep.subr.bf16.mxu0 0
    %318 = vmatpush1.bf16.msra.mxu0 0
    %319 = vmatprep.subr.bf16.mxu0 %v287
    %320 = vmatpush1.bf16.msra.mxu0 %v286
    %321 = vmatprep.subr.bf16.mxu0 %v281
    %322 = vmatpush1.bf16.msra.mxu0 %v280
    %323 = vmatprep.subr.bf16.mxu0 0
    %324 = vmatpush2.bf16.msra.mxu0 0
    %325 = vmatprep.subr.bf16.mxu0 0
    %326 = vmatpush2.bf16.msra.mxu0 0
    %327 = vmatprep.subr.bf16.mxu0 0
    %328 = vmatpush2.bf16.msra.mxu0 0
    %329 = vmatprep.subr.bf16.mxu0 0
    %330 = vmatpush2.bf16.msra.mxu0 0
    %331 = vmatprep.subr.bf16.mxu0 0
    %332 = vmatpush2.bf16.msra.mxu0 0
    %333 = vmatprep.subr.bf16.mxu0 0
    %334 = vmatpush2.bf16.msra.mxu0 0
    %335 = vmatprep.subr.bf16.mxu0 0
    %336 = vmatpush2.bf16.msra.mxu0 0
    %337 = vmatprep.subr.bf16.mxu0 0
    %338 = vmatpush2.bf16.msra.mxu0 0
    %339 = vmatprep.mubr.bf16.mxu0 0
    %340 = vmatmul.mubr.bf16.gmra.mxu0 %v305
    %v341 = vpop.f32.mrf.mxu0
    %v342 = vadd.f32 %v217, %v341
    %v343 = vpop.f32.mrf.mxu0
    %v344 = vadd.f32 %v221, %v343
    %v345 = vpop.f32.mrf.mxu0
    %v346 = vadd.f32 %v217, %v345
    %v347 = vpop.f32.mrf.mxu0
    %v348 = vadd.f32 %v221, %v347
    %349 = vdwg.mxu0
    %350 = vmatprep.subr.bf16.mxu0 0
    %351 = vmatpush1.bf16.msra.mxu0 0
    %352 = vmatprep.subr.bf16.mxu0 0
    %353 = vmatpush1.bf16.msra.mxu0 0
    %354 = vmatprep.subr.bf16.mxu0 0
    %355 = vmatpush1.bf16.msra.mxu0 0
    %356 = vmatprep.subr.bf16.mxu0 0
    %357 = vmatpush1.bf16.msra.mxu0 0
    %358 = vmatprep.subr.bf16.mxu0 0
    %359 = vmatpush1.bf16.msra.mxu0 0
    %360 = vmatprep.subr.bf16.mxu0 0
    %361 = vmatpush1.bf16.msra.mxu0 0
    %362 = vmatprep.subr.bf16.mxu0 %v289
    %363 = vmatpush1.bf16.msra.mxu0 %v288
    %364 = vmatprep.subr.bf16.mxu0 %v283
    %365 = vmatpush1.bf16.msra.mxu0 %v282
    %366 = vmatprep.subr.bf16.mxu0 0
    %367 = vmatpush2.bf16.msra.mxu0 0
    %368 = vmatprep.subr.bf16.mxu0 0
    %369 = vmatpush2.bf16.msra.mxu0 0
    %370 = vmatprep.subr.bf16.mxu0 0
    %371 = vmatpush2.bf16.msra.mxu0 0
    %372 = vmatprep.subr.bf16.mxu0 0
    %373 = vmatpush2.bf16.msra.mxu0 0
    %374 = vmatprep.subr.bf16.mxu0 0
    %375 = vmatpush2.bf16.msra.mxu0 0
    %376 = vmatprep.subr.bf16.mxu0 0
    %377 = vmatpush2.bf16.msra.mxu0 0
    %378 = vmatprep.subr.bf16.mxu0 0
    %379 = vmatpush2.bf16.msra.mxu0 0
    %380 = vmatprep.subr.bf16.mxu0 0
    %381 = vmatpush2.bf16.msra.mxu0 0
    %382 = vmatprep.mubr.bf16.mxu0 0
    %383 = vmatmul.mubr.bf16.gmra.mxu0 %v305
    %v384 = vpop.f32.mrf.mxu0
    %v385 = vadd.f32 %v225, %v384
    %v386 = vpop.f32.mrf.mxu0
    %v387 = vadd.f32 %v229, %v386
    %v388 = vpop.f32.mrf.mxu0
    %v389 = vadd.f32 %v225, %v388
    %v390 = vpop.f32.mrf.mxu0
    %v391 = vadd.f32 %v229, %v390
    %392 = vdwg.mxu0
    %393 = vmatprep.subr.bf16.mxu0 0
    %394 = vmatpush1.bf16.msra.mxu0 0
    %395 = vmatprep.subr.bf16.mxu0 0
    %396 = vmatpush1.bf16.msra.mxu0 0
    %397 = vmatprep.subr.bf16.mxu0 0
    %398 = vmatpush1.bf16.msra.mxu0 0
    %399 = vmatprep.subr.bf16.mxu0 0
    %400 = vmatpush1.bf16.msra.mxu0 0
    %401 = vmatprep.subr.bf16.mxu0 0
    %402 = vmatpush1.bf16.msra.mxu0 0
    %403 = vmatprep.subr.bf16.mxu0 0
    %404 = vmatpush1.bf16.msra.mxu0 0
    %405 = vmatprep.subr.bf16.mxu0 %v291
    %406 = vmatpush1.bf16.msra.mxu0 %v290
    %407 = vmatprep.subr.bf16.mxu0 %v285
    %408 = vmatpush1.bf16.msra.mxu0 %v284
    %409 = vmatprep.subr.bf16.mxu0 0
    %410 = vmatpush2.bf16.msra.mxu0 0
    %411 = vmatprep.subr.bf16.mxu0 0
    %412 = vmatpush2.bf16.msra.mxu0 0
    %413 = vmatprep.subr.bf16.mxu0 0
    %414 = vmatpush2.bf16.msra.mxu0 0
    %415 = vmatprep.subr.bf16.mxu0 0
    %416 = vmatpush2.bf16.msra.mxu0 0
    %417 = vmatprep.subr.bf16.mxu0 0
    %418 = vmatpush2.bf16.msra.mxu0 0
    %419 = vmatprep.subr.bf16.mxu0 0
    %420 = vmatpush2.bf16.msra.mxu0 0
    %421 = vmatprep.subr.bf16.mxu0 0
    %422 = vmatpush2.bf16.msra.mxu0 0
    %423 = vmatprep.subr.bf16.mxu0 0
    %424 = vmatpush2.bf16.msra.mxu0 0
    %425 = vmatprep.mubr.bf16.mxu0 0
    %426 = vmatmul.mubr.bf16.gmra.mxu0 %v305
    %v427 = vpop.f32.mrf.mxu0
    %v428 = vadd.f32 %v233, %v427
    %v429 = vpop.f32.mrf.mxu0
    %v430 = vadd.f32 %v237, %v429
    %v431 = vpop.f32.mrf.mxu0
    %v432 = vadd.f32 %v233, %v431
    %v433 = vpop.f32.mrf.mxu0
    %v434 = vadd.f32 %v237, %v433
    %435 = vdwg.mxu0
    %436 = vst [vmem:[#allocation8] sm:$0xff] %v342
    %437 = vst [vmem:[#allocation8 + $0x8] sm:$0xff] %v344
    %438 = vst [vmem:[#allocation8 + $0x10] sm:$0xff] %v385
    %439 = vst [vmem:[#allocation8 + $0x18] sm:$0xff] %v387
    %440 = vst [vmem:[#allocation8 + $0x20] sm:$0xff] %v428
    %441 = vst [vmem:[#allocation8 + $0x28] sm:$0xff] %v430
    %442 = vst [vmem:[#allocation8 + $0x30] sm:$0xff] %v346
    %443 = vst [vmem:[#allocation8 + $0x38] sm:$0xff] %v348
    %444 = vst [vmem:[#allocation8 + $0x40] sm:$0xff] %v389
    %445 = vst [vmem:[#allocation8 + $0x48] sm:$0xff] %v391
    %446 = vst [vmem:[#allocation8 + $0x50] sm:$0xff] %v432
    %447 = vst [vmem:[#allocation8 + $0x58] sm:$0xff] %v434
    // Predicated region
    $region42: #{tpu_custom_call.1} parent=1 // pred_check
      _
    $region43: #{tpu_custom_call.1} parent=1 // pred_check_branch
      %449 = sbr.rel (0) target = $region45
    $region44: #{tpu_custom_call.1} parent=1 // pred_region
      %s451 = ssub.s32 1536, 1536
      %452 = vsyncadd [#allocation4], %s451
      %s453 = sshll.u32 [#allocation8], 4
      %s454 = int_to_ptr.vmem [resolvable:$true] %s453
      %459 = dma.vmem_to_hbm [thread:$0]  %s454, 1536, %s7, [#allocation4], 768, 768, 48
    $region45: #{tpu_custom_call.1} parent=1 // pred_fallthru
      _
    // Predicated region
    $region46: #{tpu_custom_call.1} parent=1 // pred_check
      _
    $region47: #{tpu_custom_call.1} parent=1 // pred_check_branch
      %461 = sbr.rel (0) target = $region49
    $region48: #{tpu_custom_call.1} parent=1 // pred_region
      %462 = dma.done [#allocation4], 1536
    $region49: #{tpu_custom_call.1} parent=1 // pred_fallthru
      _
    %463 = vsyncpa [#allocation3], 1
    %464 = vsyncpa [#allocation6], 1
    %465 = vsyncpa [#allocation4], 1

</llo_original>
